<compile_context>
chip_gen: v5e
topology: v5e:2x2
jax: 0.10.0
libtpu: 0.0.40
codegen_flags: <defaults>
</compile_context>

<pallas_src>
import jax
import jax.numpy as jnp
from jax.experimental import pallas as pl
from jax.experimental.pallas import tpu as pltpu

# Logical layer widths of the PyTorch module.
LAYER_DIMS = [11, 16, 32, 64, 128, 64, 32, 32, 3]   # 8 Linear layers total
N_LAYERS = len(LAYER_DIMS) - 1                       # = 8
IN_DIM = LAYER_DIMS[0]                               # 11
OUT_DIM = LAYER_DIMS[-1]                             # 3
PAD = 128                                            # fan_out lane pad
K_PAD = 16                                           # bf16 sublane tile (fan_in pad)
BN_EPS = 1e-5

MAX_TILE_B = 512                                     # sweep 256/512/1024 on real workloads
MIN_TILE_B = 8


def _round_up(n, m):
    return ((n + m - 1) // m) * m


def _cdiv(a, b):
    return (a + b - 1) // b


# Sublane-packed weight layout: per-layer fan_in padded to 16, layers concatenated.
K_SIZES = [_round_up(d, K_PAD) for d in LAYER_DIMS[:-1]]   # [16,16,32,64,128,64,32,32]
K_OFFSETS = [0]
for _s in K_SIZES[:-1]:
    K_OFFSETS.append(K_OFFSETS[-1] + _s)
K_TOTAL = sum(K_SIZES)                                     # 384


def actionnet_kernel(x_ref, w_ref, b_ref, out_ref, xpad_ref):
    """One batch tile of the whole MLP.

    x_ref   : (TILE_B, 11)   f32   raw input features (unpadded in HBM)
    w_ref   : (384, 128)     bf16  sublane-packed weights (fan_in_pad16, fan_out_pad128),
                                   eval-mode BatchNorm folded into layer 0
    b_ref   : (8, 128)       bf16  zero-padded biases (layer 0 folded)
    out_ref : (TILE_B, 3)    f32   logits
    xpad_ref: (TILE_B, 16)   f32   scratch used to lane-pad the input 11 -> 16
    """
    # Lane-pad 11 -> 16 in VMEM.  Pad lanes are zeroed every step (megacore-safe;
    # uninitialized VMEM may hold NaNs and NaN*0 = NaN), which is only a 5-lane
    # masked store now that the scratch is 16 lanes wide.
    xpad_ref[:, IN_DIM:K_PAD] = jnp.zeros(
        (x_ref.shape[0], K_PAD - IN_DIM), jnp.float32)
    xpad_ref[:, 0:IN_DIM] = x_ref[...]
    h = xpad_ref[...].astype(jnp.bfloat16)               # (TILE_B, 16) bf16

    # 7 hidden Linear+ReLU layers, then the classifier Linear (no ReLU).
    # Static unroll: each layer has a different static K in the packed layout.
    for layer in range(N_LAYERS):
        off, k = K_OFFSETS[layer], K_SIZES[layer]
        acc = jnp.dot(h[:, 0:k], w_ref[off:off + k, :],
                      preferred_element_type=jnp.float32)   # f32 MXU accumulate
        if layer < N_LAYERS - 1:
            # bf16 epilogue: bias + ReLU in bf16 (halves VALU work / live vregs).
            h = jnp.maximum(acc.astype(jnp.bfloat16) + b_ref[layer, :], 0)
        else:
            out = acc + b_ref[layer, :].astype(jnp.float32)  # final layer in f32
            out_ref[...] = out[:, 0:OUT_DIM].astype(out_ref.dtype)


@jax.jit
def actionnet_forward(x, w_packed, b_stack):
    """x: (B, 11) float32 -> logits (B, 3) float32 (eval-mode ActionNet)."""
    B = x.shape[0]
    b_pad8 = _round_up(B, MIN_TILE_B)
    tile_b = min(MAX_TILE_B, b_pad8)
    if b_pad8 >= 2 * MIN_TILE_B:
        # Guarantee >= 2 grid steps so the ("parallel",) batch axis can shard
        # across v7x's two TensorCores (no-op on single-TC v5e/v6e).
        tile_b = min(tile_b, _round_up(_cdiv(b_pad8, 2), MIN_TILE_B))
    grid = (_cdiv(B, tile_b),)   # ragged last block is masked by Pallas

    return pl.pallas_call(
        actionnet_kernel,
        out_shape=jax.ShapeDtypeStruct((B, OUT_DIM), jnp.float32),
        grid=grid,
        in_specs=[
            pl.BlockSpec((tile_b, IN_DIM), lambda i: (i, 0)),
            # Constant index maps: packed weight/bias stacks (~98 KiB) are
            # fetched once and stay VMEM-resident across all batch tiles.
            pl.BlockSpec((K_TOTAL, PAD), lambda i: (0, 0)),
            pl.BlockSpec((N_LAYERS, PAD), lambda i: (0, 0)),
        ],
        out_specs=pl.BlockSpec((tile_b, OUT_DIM), lambda i: (i, 0)),
        scratch_shapes=[pltpu.VMEM((tile_b, K_PAD), jnp.float32)],
        compiler_params=pltpu.CompilerParams(
            dimension_semantics=("parallel",)),   # megacore sharding on v7x
    )(x, w_packed, b_stack)


def init_torch_like_params(key):
    """Random params mimicking a trained PyTorch ActionNet (eval-mode BN stats)."""
    params = {}
    key, k1, k2, k3, k4 = jax.random.split(key, 5)
    params["bn_gamma"] = jax.random.uniform(k1, (IN_DIM,), jnp.float32, 0.5, 1.5)
    params["bn_beta"] = 0.1 * jax.random.normal(k2, (IN_DIM,), jnp.float32)
    params["bn_mean"] = 0.5 * jax.random.normal(k3, (IN_DIM,), jnp.float32)
    params["bn_var"] = jax.random.uniform(k4, (IN_DIM,), jnp.float32, 0.5, 1.5)
    params["w"], params["b"] = [], []
    for layer in range(N_LAYERS):
        fan_in, fan_out = LAYER_DIMS[layer], LAYER_DIMS[layer + 1]
        key, kw, kb = jax.random.split(key, 3)
        bound = 1.0 / (fan_in ** 0.5)              # PyTorch nn.Linear default range
        params["w"].append(jax.random.uniform(kw, (fan_in, fan_out), jnp.float32,
                                              -bound, bound))
        params["b"].append(jax.random.uniform(kb, (fan_out,), jnp.float32,
                                              -bound, bound))
    return params


def prepare_kernel_params(params):
    """Fold eval-mode BatchNorm into layer 0, sublane-pack fan_in to 16,
    lane-pad fan_out to 128, concatenate layers, cast to bf16."""
    scale = params["bn_gamma"] / jnp.sqrt(params["bn_var"] + BN_EPS)     # (11,)
    shift = params["bn_beta"] - params["bn_mean"] * scale                # (11,)
    w0 = params["w"][0] * scale[:, None]                                 # (11,16)
    b0 = params["b"][0] + shift @ params["w"][0]                         # (16,)

    w_packed = jnp.zeros((K_TOTAL, PAD), jnp.float32)
    b_stack = jnp.zeros((N_LAYERS, PAD), jnp.float32)
    for layer in range(N_LAYERS):
        fan_in, fan_out = LAYER_DIMS[layer], LAYER_DIMS[layer + 1]
        w = w0 if layer == 0 else params["w"][layer]
        b = b0 if layer == 0 else params["b"][layer]
        off = K_OFFSETS[layer]
        w_packed = w_packed.at[off:off + fan_in, :fan_out].set(w)
        b_stack = b_stack.at[layer, :fan_out].set(b)
    return w_packed.astype(jnp.bfloat16), b_stack.astype(jnp.bfloat16)


def reference_forward_f32(x, params):
    """Pure-f32, unfolded eval-mode reference (PyTorch semantics)."""
    scale = params["bn_gamma"] / jnp.sqrt(params["bn_var"] + BN_EPS)
    h = (x - params["bn_mean"]) * scale + params["bn_beta"]
    for layer in range(N_LAYERS):
        h = h @ params["w"][layer] + params["b"][layer]
        if layer < N_LAYERS - 1:
            h = jnp.maximum(h, 0.0)
    return h


def reference_forward_like_kernel(x, w_packed, b_stack):
    """Plain-JAX reference replicating the kernel numerics (folded BN, packed K,
    bf16 matmul operands with f32 accumulation, bf16 hidden epilogue)."""
    h_f32 = jnp.zeros((x.shape[0], K_PAD), jnp.float32).at[:, :IN_DIM].set(x)
    h = h_f32.astype(jnp.bfloat16)
    out = None
    for layer in range(N_LAYERS):
        off, k = K_OFFSETS[layer], K_SIZES[layer]
        acc = jnp.dot(h[:, :k], w_packed[off:off + k, :],
                      preferred_element_type=jnp.float32)
        if layer < N_LAYERS - 1:
            h = jnp.maximum(acc.astype(jnp.bfloat16) + b_stack[layer], 0)
        else:
            out = acc + b_stack[layer].astype(jnp.float32)
    return out[:, :OUT_DIM]


if __name__ == "__main__":
    key = jax.random.PRNGKey(0)
    key, kx = jax.random.split(key)

    B = 2
    x = jax.random.normal(kx, (B, IN_DIM), jnp.float32)   # ActionNet input: (batch, 11)

    params = init_torch_like_params(key)
    w_packed, b_stack = prepare_kernel_params(params)

    logits = jax.block_until_ready(actionnet_forward(x, w_packed, b_stack))
    assert logits.shape == (B, OUT_DIM), logits.shape

    # Tight check against a plain-JAX reference with identical numerics.
    ref_exact = reference_forward_like_kernel(x, w_packed, b_stack)
    assert jnp.allclose(logits, ref_exact, atol=2e-3, rtol=2e-3), (logits, ref_exact)

    # Loose sanity check against the pure-f32 unfolded module (difference is
    # only bf16 weight/bias/activation quantization).
    ref_f32 = reference_forward_f32(x, params)
    assert jnp.allclose(logits, ref_f32, atol=1e-1, rtol=1e-1), (logits, ref_f32)

    print("KERNEL_OK")
</pallas_src>

<mosaic_0001>
module attributes {stable_mosaic.version = 11 : i64} {
  func.func @actionnet_kernel(%arg0: i32, %arg1: memref<8x11xf32, #tpu.memory_space<vmem>>, %arg2: memref<384x128xbf16, #tpu.memory_space<vmem>>, %arg3: memref<8x128xbf16, #tpu.memory_space<vmem>>, %arg4: memref<8x3xf32, #tpu.memory_space<vmem>>, %arg5: memref<8x16xf32, #tpu.memory_space<vmem>>) attributes {dimension_semantics = [#tpu.dimension_semantics<parallel>], iteration_bounds = array<i64: 1>, scalar_prefetch = 0 : i64, scratch_operands = 1 : i64, tpu.core_type = #tpu.core_type<tc>, window_params = [{transform_indices = @transform_0, window_bounds = array<i64: 8, 11>}, {pipeline_mode = #tpu.pipeline_mode<synchronous>, transform_indices = @transform_1, window_bounds = array<i64: 384, 128>}, {pipeline_mode = #tpu.pipeline_mode<synchronous>, transform_indices = @transform_2, window_bounds = array<i64: 8, 128>}, {transform_indices = @transform_3, window_bounds = array<i64: 8, 3>}]} {
    %cst = arith.constant 0.000000e+00 : f32
    %0 = vector.broadcast %cst : f32 to vector<8x5xf32>
    %c0 = arith.constant 0 : index
    %c11 = arith.constant 11 : index
    %1 = vector.load %arg5[%c0, %c11] : memref<8x16xf32, #tpu.memory_space<vmem>>, vector<8x5xf32>
    tpu.vector_store %arg5[%c0, %c11], %0 {strides = array<i32>} : memref<8x16xf32, #tpu.memory_space<vmem>>, vector<8x5xf32>,
    %c0_0 = arith.constant 0 : index
    %c0_1 = arith.constant 0 : index
    %2 = vector.load %arg1[%c0_0, %c0_1] : memref<8x11xf32, #tpu.memory_space<vmem>>, vector<8x11xf32>
    %c0_2 = arith.constant 0 : index
    %c0_3 = arith.constant 0 : index
    %3 = vector.load %arg5[%c0_2, %c0_3] : memref<8x16xf32, #tpu.memory_space<vmem>>, vector<8x11xf32>
    tpu.vector_store %arg5[%c0_2, %c0_3], %2 {strides = array<i32>} : memref<8x16xf32, #tpu.memory_space<vmem>>, vector<8x11xf32>,
    %c0_4 = arith.constant 0 : index
    %c0_5 = arith.constant 0 : index
    %4 = vector.load %arg5[%c0_4, %c0_5] : memref<8x16xf32, #tpu.memory_space<vmem>>, vector<8x16xf32>
    %5 = arith.truncf %4 : vector<8x16xf32> to vector<8x16xbf16>
    %c0_6 = arith.constant 0 : index
    %c0_7 = arith.constant 0 : index
    %6 = vector.load %arg2[%c0_6, %c0_7] : memref<384x128xbf16, #tpu.memory_space<vmem>>, vector<16x128xbf16>
    %cst_8 = arith.constant dense<0.000000e+00> : vector<8x128xf32>
    %7 = tpu.matmul %5, %6, %cst_8 {dimension_numbers = #tpu.dot_dimension_numbers<[1], [0], [0], [1], [0, 0, 1, 1], [], []>} : vector<8x16xbf16>, vector<16x128xbf16>, vector<8x128xf32> -> vector<8x128xf32>
    %8 = arith.truncf %7 : vector<8x128xf32> to vector<8x128xbf16>
    %c0_9 = arith.constant 0 : index
    %c0_10 = arith.constant 0 : index
    %9 = vector.load %arg3[%c0_9, %c0_10] : memref<8x128xbf16, #tpu.memory_space<vmem>>, vector<1x128xbf16>
    %10 = vector.shape_cast %9 : vector<1x128xbf16> to vector<128xbf16>
    %11 = vector.shape_cast %10 : vector<128xbf16> to vector<1x128xbf16>
    %12 = vector.broadcast %11 : vector<1x128xbf16> to vector<8x128xbf16>
    %13 = arith.addf %8, %12 : vector<8x128xbf16>
    %cst_11 = arith.constant 0.000000e+00 : bf16
    %14 = vector.broadcast %cst_11 : bf16 to vector<8x128xbf16>
    %15 = arith.maximumf %13, %14 : vector<8x128xbf16>
    %16 = vector.extract_strided_slice %15 {offsets = [0, 0], sizes = [8, 16], strides = [1, 1]} : vector<8x128xbf16> to vector<8x16xbf16>
    %c16 = arith.constant 16 : index
    %c0_12 = arith.constant 0 : index
    %17 = vector.load %arg2[%c16, %c0_12] : memref<384x128xbf16, #tpu.memory_space<vmem>>, vector<16x128xbf16>
    %cst_13 = arith.constant dense<0.000000e+00> : vector<8x128xf32>
    %18 = tpu.matmul %16, %17, %cst_13 {dimension_numbers = #tpu.dot_dimension_numbers<[1], [0], [0], [1], [0, 0, 1, 1], [], []>} : vector<8x16xbf16>, vector<16x128xbf16>, vector<8x128xf32> -> vector<8x128xf32>
    %19 = arith.truncf %18 : vector<8x128xf32> to vector<8x128xbf16>
    %c1 = arith.constant 1 : index
    %c0_14 = arith.constant 0 : index
    %20 = vector.load %arg3[%c1, %c0_14] : memref<8x128xbf16, #tpu.memory_space<vmem>>, vector<1x128xbf16>
    %21 = vector.shape_cast %20 : vector<1x128xbf16> to vector<128xbf16>
    %22 = vector.shape_cast %21 : vector<128xbf16> to vector<1x128xbf16>
    %23 = vector.broadcast %22 : vector<1x128xbf16> to vector<8x128xbf16>
    %24 = arith.addf %19, %23 : vector<8x128xbf16>
    %cst_15 = arith.constant 0.000000e+00 : bf16
    %25 = vector.broadcast %cst_15 : bf16 to vector<8x128xbf16>
    %26 = arith.maximumf %24, %25 : vector<8x128xbf16>
    %27 = vector.extract_strided_slice %26 {offsets = [0, 0], sizes = [8, 32], strides = [1, 1]} : vector<8x128xbf16> to vector<8x32xbf16>
    %c32 = arith.constant 32 : index
    %c0_16 = arith.constant 0 : index
    %28 = vector.load %arg2[%c32, %c0_16] : memref<384x128xbf16, #tpu.memory_space<vmem>>, vector<32x128xbf16>
    %cst_17 = arith.constant dense<0.000000e+00> : vector<8x128xf32>
    %29 = tpu.matmul %27, %28, %cst_17 {dimension_numbers = #tpu.dot_dimension_numbers<[1], [0], [0], [1], [0, 0, 1, 1], [], []>} : vector<8x32xbf16>, vector<32x128xbf16>, vector<8x128xf32> -> vector<8x128xf32>
    %30 = arith.truncf %29 : vector<8x128xf32> to vector<8x128xbf16>
    %c2 = arith.constant 2 : index
    %c0_18 = arith.constant 0 : index
    %31 = vector.load %arg3[%c2, %c0_18] : memref<8x128xbf16, #tpu.memory_space<vmem>>, vector<1x128xbf16>
    %32 = vector.shape_cast %31 : vector<1x128xbf16> to vector<128xbf16>
    %33 = vector.shape_cast %32 : vector<128xbf16> to vector<1x128xbf16>
    %34 = vector.broadcast %33 : vector<1x128xbf16> to vector<8x128xbf16>
    %35 = arith.addf %30, %34 : vector<8x128xbf16>
    %cst_19 = arith.constant 0.000000e+00 : bf16
    %36 = vector.broadcast %cst_19 : bf16 to vector<8x128xbf16>
    %37 = arith.maximumf %35, %36 : vector<8x128xbf16>
    %38 = vector.extract_strided_slice %37 {offsets = [0, 0], sizes = [8, 64], strides = [1, 1]} : vector<8x128xbf16> to vector<8x64xbf16>
    %c64 = arith.constant 64 : index
    %c0_20 = arith.constant 0 : index
    %39 = vector.load %arg2[%c64, %c0_20] : memref<384x128xbf16, #tpu.memory_space<vmem>>, vector<64x128xbf16>
    %cst_21 = arith.constant dense<0.000000e+00> : vector<8x128xf32>
    %40 = tpu.matmul %38, %39, %cst_21 {dimension_numbers = #tpu.dot_dimension_numbers<[1], [0], [0], [1], [0, 0, 1, 1], [], []>} : vector<8x64xbf16>, vector<64x128xbf16>, vector<8x128xf32> -> vector<8x128xf32>
    %41 = arith.truncf %40 : vector<8x128xf32> to vector<8x128xbf16>
    %c3 = arith.constant 3 : index
    %c0_22 = arith.constant 0 : index
    %42 = vector.load %arg3[%c3, %c0_22] : memref<8x128xbf16, #tpu.memory_space<vmem>>, vector<1x128xbf16>
    %43 = vector.shape_cast %42 : vector<1x128xbf16> to vector<128xbf16>
    %44 = vector.shape_cast %43 : vector<128xbf16> to vector<1x128xbf16>
    %45 = vector.broadcast %44 : vector<1x128xbf16> to vector<8x128xbf16>
    %46 = arith.addf %41, %45 : vector<8x128xbf16>
    %cst_23 = arith.constant 0.000000e+00 : bf16
    %47 = vector.broadcast %cst_23 : bf16 to vector<8x128xbf16>
    %48 = arith.maximumf %46, %47 : vector<8x128xbf16>
    %c128 = arith.constant 128 : index
    %c0_24 = arith.constant 0 : index
    %49 = vector.load %arg2[%c128, %c0_24] : memref<384x128xbf16, #tpu.memory_space<vmem>>, vector<128x128xbf16>
    %cst_25 = arith.constant dense<0.000000e+00> : vector<8x128xf32>
    %50 = tpu.matmul %48, %49, %cst_25 {dimension_numbers = #tpu.dot_dimension_numbers<[1], [0], [0], [1], [0, 0, 1, 1], [], []>} : vector<8x128xbf16>, vector<128x128xbf16>, vector<8x128xf32> -> vector<8x128xf32>
    %51 = arith.truncf %50 : vector<8x128xf32> to vector<8x128xbf16>
    %c4 = arith.constant 4 : index
    %c0_26 = arith.constant 0 : index
    %52 = vector.load %arg3[%c4, %c0_26] : memref<8x128xbf16, #tpu.memory_space<vmem>>, vector<1x128xbf16>
    %53 = vector.shape_cast %52 : vector<1x128xbf16> to vector<128xbf16>
    %54 = vector.shape_cast %53 : vector<128xbf16> to vector<1x128xbf16>
    %55 = vector.broadcast %54 : vector<1x128xbf16> to vector<8x128xbf16>
    %56 = arith.addf %51, %55 : vector<8x128xbf16>
    %cst_27 = arith.constant 0.000000e+00 : bf16
    %57 = vector.broadcast %cst_27 : bf16 to vector<8x128xbf16>
    %58 = arith.maximumf %56, %57 : vector<8x128xbf16>
    %59 = vector.extract_strided_slice %58 {offsets = [0, 0], sizes = [8, 64], strides = [1, 1]} : vector<8x128xbf16> to vector<8x64xbf16>
    %c256 = arith.constant 256 : index
    %c0_28 = arith.constant 0 : index
    %60 = vector.load %arg2[%c256, %c0_28] : memref<384x128xbf16, #tpu.memory_space<vmem>>, vector<64x128xbf16>
    %cst_29 = arith.constant dense<0.000000e+00> : vector<8x128xf32>
    %61 = tpu.matmul %59, %60, %cst_29 {dimension_numbers = #tpu.dot_dimension_numbers<[1], [0], [0], [1], [0, 0, 1, 1], [], []>} : vector<8x64xbf16>, vector<64x128xbf16>, vector<8x128xf32> -> vector<8x128xf32>
    %62 = arith.truncf %61 : vector<8x128xf32> to vector<8x128xbf16>
    %c5 = arith.constant 5 : index
    %c0_30 = arith.constant 0 : index
    %63 = vector.load %arg3[%c5, %c0_30] : memref<8x128xbf16, #tpu.memory_space<vmem>>, vector<1x128xbf16>
    %64 = vector.shape_cast %63 : vector<1x128xbf16> to vector<128xbf16>
    %65 = vector.shape_cast %64 : vector<128xbf16> to vector<1x128xbf16>
    %66 = vector.broadcast %65 : vector<1x128xbf16> to vector<8x128xbf16>
    %67 = arith.addf %62, %66 : vector<8x128xbf16>
    %cst_31 = arith.constant 0.000000e+00 : bf16
    %68 = vector.broadcast %cst_31 : bf16 to vector<8x128xbf16>
    %69 = arith.maximumf %67, %68 : vector<8x128xbf16>
    %70 = vector.extract_strided_slice %69 {offsets = [0, 0], sizes = [8, 32], strides = [1, 1]} : vector<8x128xbf16> to vector<8x32xbf16>
    %c320 = arith.constant 320 : index
    %c0_32 = arith.constant 0 : index
    %71 = vector.load %arg2[%c320, %c0_32] : memref<384x128xbf16, #tpu.memory_space<vmem>>, vector<32x128xbf16>
    %cst_33 = arith.constant dense<0.000000e+00> : vector<8x128xf32>
    %72 = tpu.matmul %70, %71, %cst_33 {dimension_numbers = #tpu.dot_dimension_numbers<[1], [0], [0], [1], [0, 0, 1, 1], [], []>} : vector<8x32xbf16>, vector<32x128xbf16>, vector<8x128xf32> -> vector<8x128xf32>
    %73 = arith.truncf %72 : vector<8x128xf32> to vector<8x128xbf16>
    %c6 = arith.constant 6 : index
    %c0_34 = arith.constant 0 : index
    %74 = vector.load %arg3[%c6, %c0_34] : memref<8x128xbf16, #tpu.memory_space<vmem>>, vector<1x128xbf16>
    %75 = vector.shape_cast %74 : vector<1x128xbf16> to vector<128xbf16>
    %76 = vector.shape_cast %75 : vector<128xbf16> to vector<1x128xbf16>
    %77 = vector.broadcast %76 : vector<1x128xbf16> to vector<8x128xbf16>
    %78 = arith.addf %73, %77 : vector<8x128xbf16>
    %cst_35 = arith.constant 0.000000e+00 : bf16
    %79 = vector.broadcast %cst_35 : bf16 to vector<8x128xbf16>
    %80 = arith.maximumf %78, %79 : vector<8x128xbf16>
    %81 = vector.extract_strided_slice %80 {offsets = [0, 0], sizes = [8, 32], strides = [1, 1]} : vector<8x128xbf16> to vector<8x32xbf16>
    %c352 = arith.constant 352 : index
    %c0_36 = arith.constant 0 : index
    %82 = vector.load %arg2[%c352, %c0_36] : memref<384x128xbf16, #tpu.memory_space<vmem>>, vector<32x128xbf16>
    %cst_37 = arith.constant dense<0.000000e+00> : vector<8x128xf32>
    %83 = tpu.matmul %81, %82, %cst_37 {dimension_numbers = #tpu.dot_dimension_numbers<[1], [0], [0], [1], [0, 0, 1, 1], [], []>} : vector<8x32xbf16>, vector<32x128xbf16>, vector<8x128xf32> -> vector<8x128xf32>
    %c7 = arith.constant 7 : index
    %c0_38 = arith.constant 0 : index
    %84 = vector.load %arg3[%c7, %c0_38] : memref<8x128xbf16, #tpu.memory_space<vmem>>, vector<1x128xbf16>
    %85 = vector.shape_cast %84 : vector<1x128xbf16> to vector<128xbf16>
    %86 = arith.extf %85 : vector<128xbf16> to vector<128xf32>
    %87 = vector.shape_cast %86 : vector<128xf32> to vector<1x128xf32>
    %88 = vector.broadcast %87 : vector<1x128xf32> to vector<8x128xf32>
    %89 = arith.addf %83, %88 : vector<8x128xf32>
    %90 = vector.extract_strided_slice %89 {offsets = [0, 0], sizes = [8, 3], strides = [1, 1]} : vector<8x128xf32> to vector<8x3xf32>
    %c0_39 = arith.constant 0 : index
    %c0_40 = arith.constant 0 : index
    %91 = vector.load %arg4[%c0_39, %c0_40] : memref<8x3xf32, #tpu.memory_space<vmem>>, vector<8x3xf32>
    tpu.vector_store %arg4[%c0_39, %c0_40], %90 {strides = array<i32>} : memref<8x3xf32, #tpu.memory_space<vmem>>, vector<8x3xf32>,
    return
  }
  func.func @transform_0(%arg0: i32) -> (i32, i32) {
    %c0_i32 = arith.constant 0 : i32
    %c0_i32_0 = arith.constant 0 : i32
    return %arg0, %c0_i32 : i32, i32
  }
  func.func @transform_1(%arg0: i32) -> (i32, i32) {
    %c0_i32 = arith.constant 0 : i32
    %c0_i32_0 = arith.constant 0 : i32
    %c0_i32_1 = arith.constant 0 : i32
    return %c0_i32, %c0_i32_0 : i32, i32
  }
  func.func @transform_2(%arg0: i32) -> (i32, i32) {
    %c0_i32 = arith.constant 0 : i32
    %c0_i32_0 = arith.constant 0 : i32
    %c0_i32_1 = arith.constant 0 : i32
    return %c0_i32, %c0_i32_0 : i32, i32
  }
  func.func @transform_3(%arg0: i32) -> (i32, i32) {
    %c0_i32 = arith.constant 0 : i32
    %c0_i32_0 = arith.constant 0 : i32
    return %arg0, %c0_i32 : i32, i32
  }
}

</mosaic_0001>

<llo_original>
// kernel: actionnet_forward.1
$region0: #{actionnet_forward.1}
  #allocation0 [shape = 'u32[]', space=smem, size = 0x4, offset = 0x4, fixed_abs, tag = 'smem constant byte address 0x4 - core index']
  #allocation1 [shape = 'u32[72,128]{1,0:T(1,128)}', space=vmem, size = 0x9000, scoped, tag = 'internal scratch']
  #allocation2 [shape = 'f32[8,16]{1,0:T(8,128)}', space=vmem, size = 0x1000, scoped, tag = 'scratch operand']
  %s0 = inlined_call_operand.hbm [shape: f32[2,11], index: 0, kind: input, shape index: {}]
  %s1 = inlined_call_operand.hbm [shape: bf16[384,128], index: 1, kind: input, shape index: {}]
  %s2 = inlined_call_operand.hbm [shape: bf16[8,128], index: 2, kind: input, shape index: {}]
  %s3 = inlined_call_operand.hbm [shape: f32[2,3], index: 3, kind: output, shape index: {}]
  %s4 = sld [smem:[#allocation0]]
  $region34: #{actionnet_forward.1} parent=0
    _
  %s6 = ssub.s32 1, %s4
  %s7 = scalar_select 0, %s6, %s4
  $region1: #{actionnet_forward.1} parent=0
    #allocation3 [shape = 'u8[4096]{0}', space=vmem, size = 0x1000, scoped, tag = 'input window, operand 0, single buffered']
    #allocation4 [shape = 's32[1]{0}', space=sflag, size = 0x4, scoped, tag = 'scoped memory for actionnet_forward.1']
    #allocation5 [shape = 's32[1]{0}', space=sflag, size = 0x4, scoped, tag = 'scoped memory for actionnet_forward.1']
    #allocation6 [shape = 'u8[98304]{0}', space=vmem, size = 0x18000, scoped, tag = 'input window, operand 1, single buffered']
    #allocation7 [shape = 's32[1]{0}', space=sflag, size = 0x4, scoped, tag = 'scoped memory for actionnet_forward.1']
    #allocation8 [shape = 'u8[2048]{0}', space=vmem, size = 0x800, scoped, tag = 'input window, operand 2, single buffered']
    #allocation9 [shape = 'u8[4096]{0}', space=vmem, size = 0x1000, scoped, tag = 'output window, operand 0, single buffered']
    %8 = vsyncpa [#allocation4], 0
    %9 = vsyncpa [#allocation7], 0
    %10 = vsyncpa [#allocation5], 0
    // Predicated region
    $region2: #{actionnet_forward.1} parent=1 // pred_check
      _
    $region3: #{actionnet_forward.1} parent=1 // pred_check_branch
      %12 = sbr.rel (0) target = $region5
    $region4: #{actionnet_forward.1} parent=1 // pred_region
      %14 = vsyncadd [#allocation4], 96
      %s15 = sshll.u32 %s0, 4
      %s16 = int_to_ptr.hbm [resolvable:$true] %s15
      %s17 = sshll.u32 [#allocation3], 4
      %s18 = int_to_ptr.vmem [resolvable:$true] %s17
      %23 = dma.hbm_to_vmem [thread:$0]  %s16, 32, %s18, [#allocation4], 32, 32, 2
    $region5: #{actionnet_forward.1} parent=1 // pred_fallthru
      _
    // Predicated region
    $region6: #{actionnet_forward.1} parent=1 // pred_check
      _
    $region7: #{actionnet_forward.1} parent=1 // pred_check_branch
      %25 = sbr.rel (0) target = $region9
    $region8: #{actionnet_forward.1} parent=1 // pred_region
      %27 = vsyncadd [#allocation7], 0
      %s28 = sshll.u32 %s1, 4
      %s29 = int_to_ptr.hbm [resolvable:$true] %s28
      %s30 = sshll.u32 [#allocation6], 4
      %s31 = int_to_ptr.vmem [resolvable:$true] %s30
      %36 = dma.hbm_to_vmem [thread:$0]  %s29, 3072, %s31, [#allocation7], 64, 64, 4
    $region9: #{actionnet_forward.1} parent=1 // pred_fallthru
      _
    // Predicated region
    $region10: #{actionnet_forward.1} parent=1 // pred_check
      _
    $region11: #{actionnet_forward.1} parent=1 // pred_check_branch
      %38 = sbr.rel (0) target = $region13
    $region12: #{actionnet_forward.1} parent=1 // pred_region
      %40 = vsyncadd [#allocation7], 0
      %s42 = sshll.u32 %s2, 4
      %s43 = int_to_ptr.hbm [resolvable:$true] %s42
      %s44 = sshll.u32 [#allocation8], 4
      %s45 = int_to_ptr.vmem [resolvable:$true] %s44
      %47 = dma.hbm_to_vmem [thread:$0]  %s43, 64, %s45, [#allocation7]
    $region13: #{actionnet_forward.1} parent=1 // pred_fallthru
      _
    // Predicated region
    $region14: #{actionnet_forward.1} parent=1 // pred_check
      _
    $region15: #{actionnet_forward.1} parent=1 // pred_check_branch
      %49 = sbr.rel (0) target = $region17
    $region16: #{actionnet_forward.1} parent=1 // pred_region
      %51 = dma.done [#allocation4], 128
    $region17: #{actionnet_forward.1} parent=1 // pred_fallthru
      _
    // Predicated region
    $region18: #{actionnet_forward.1} parent=1 // pred_check
      _
    $region19: #{actionnet_forward.1} parent=1 // pred_check_branch
      %53 = sbr.rel (0) target = $region21
    $region20: #{actionnet_forward.1} parent=1 // pred_region
      %55 = dma.done [#allocation7], 3072
    $region21: #{actionnet_forward.1} parent=1 // pred_fallthru
      _
    // Predicated region
    $region22: #{actionnet_forward.1} parent=1 // pred_check
      _
    $region23: #{actionnet_forward.1} parent=1 // pred_check_branch
      %57 = sbr.rel (0) target = $region25
    $region24: #{actionnet_forward.1} parent=1 // pred_region
      %59 = dma.done [#allocation7], 64
    $region25: #{actionnet_forward.1} parent=1 // pred_fallthru
      _
    %vm61 = vcmask 130136
    %62 = vst.msk [vmem:[#allocation2] sm:$0xff] %vm61, 0.0
    %v63 = vld [vmem:[#allocation3] sm:$0xff]
    %vm64 = vcmask 89088
    %65 = vst.msk [vmem:[#allocation2] sm:$0xff] %vm64, %v63
    %v66 = vld [vmem:[#allocation2] sm:$0xff]
    %v67 = vpack.c.bf16 %v66, %v66
    %v68 = vld [vmem:[#allocation6] sm:$0xf]
    %v69 = vld [vmem:[#allocation6 + $0x4] sm:$0xf]
    %v72 = vunpack.c.l.b16 %v68
    %v73 = vunpack.c.l.b16 %v69
    %v74 = vpack.c.b16 %v73, %v72
    %vm76 = vcmask 130048
    %v78 = vsel %vm76, %v67, 0
    %80 = vmatpush.bf16.msra.mxu0 0
    %81 = vmatpush.bf16.msra.mxu0 0
    %82 = vmatpush.bf16.msra.mxu0 0
    %83 = vmatpush.bf16.msra.mxu0 0
    %84 = vmatpush.bf16.msra.mxu0 0
    %85 = vmatpush.bf16.msra.mxu0 0
    %86 = vmatpush.bf16.msra.mxu0 0
    %87 = vmatpush.bf16.msra.mxu0 %v74
    %88 = vmatmul.bf16.gmra.mxu0 %v78
    %v89 = vpop.f32.mrf.mxu0
    %v90 = vadd.f32 0.0, %v89
    %v91 = vpop.f32.mrf.mxu0
    %92 = vdwg.mxu0
    %v93 = vpack.c.bf16 %v90, %v90
    %v94 = vld [vmem:[#allocation8] sm:$0x1]
    %v96 = vpack.i.b16 %v94, %v94
    %v98 = vperm.slane %v96, 0
    %v99 = vunpack.c.l.bf16 %v93
    %v100 = vunpack.c.l.bf16 %v98
    %v101 = vadd.f32 %v99, %v100
    %v102 = vpack.c.bf16 %v101, %v101
    %v103 = vunpack.c.l.bf16 %v102
    %v104 = vmax.f32 %v103, 0.0
    %v105 = vpack.c.bf16 %v104, %v104
    %v106 = vld [vmem:[#allocation6 + $0x8] sm:$0xf]
    %v107 = vld [vmem:[#allocation6 + $0xc] sm:$0xf]
    %v110 = vunpack.c.l.b16 %v106
    %v111 = vunpack.c.l.b16 %v107
    %v112 = vpack.c.b16 %v111, %v110
    %v115 = vsel %vm76, %v105, 0
    %117 = vmatpush.bf16.msra.mxu0 0
    %118 = vmatpush.bf16.msra.mxu0 0
    %119 = vmatpush.bf16.msra.mxu0 0
    %120 = vmatpush.bf16.msra.mxu0 0
    %121 = vmatpush.bf16.msra.mxu0 0
    %122 = vmatpush.bf16.msra.mxu0 0
    %123 = vmatpush.bf16.msra.mxu0 0
    %124 = vmatpush.bf16.msra.mxu0 %v112
    %125 = vmatmul.bf16.gmra.mxu0 %v115
    %v126 = vpop.f32.mrf.mxu0
    %v127 = vadd.f32 0.0, %v126
    %v128 = vpop.f32.mrf.mxu0
    %129 = vdwg.mxu0
    %v130 = vpack.c.bf16 %v127, %v127
    %v131 = vshrl.u32 %v94, 16
    %v132 = vpack.i.b16 %v131, %v131
    %v134 = vperm.slane %v132, 0
    %v135 = vunpack.c.l.bf16 %v130
    %v136 = vunpack.c.l.bf16 %v134
    %v137 = vadd.f32 %v135, %v136
    %v138 = vpack.c.bf16 %v137, %v137
    %v139 = vunpack.c.l.bf16 %v138
    %v140 = vmax.f32 %v139, 0.0
    %v141 = vpack.c.bf16 %v140, %v140
    %v142 = vld [vmem:[#allocation6 + $0x10] sm:$0xf]
    %v143 = vld [vmem:[#allocation6 + $0x14] sm:$0xf]
    %v144 = vld [vmem:[#allocation6 + $0x18] sm:$0xf]
    %v145 = vld [vmem:[#allocation6 + $0x1c] sm:$0xf]
    %v150 = vunpack.c.l.b16 %v142
    %v151 = vunpack.c.l.b16 %v143
    %v152 = vunpack.c.l.b16 %v144
    %v153 = vunpack.c.l.b16 %v145
    %v154 = vpack.c.b16 %v151, %v150
    %v155 = vpack.c.b16 %v153, %v152
    %vm158 = vcmask 261120
    %v160 = vsel %vm158, %v141, 0
    %162 = vmatpush.bf16.msra.mxu0 0
    %163 = vmatpush.bf16.msra.mxu0 0
    %164 = vmatpush.bf16.msra.mxu0 0
    %165 = vmatpush.bf16.msra.mxu0 0
    %166 = vmatpush.bf16.msra.mxu0 0
    %167 = vmatpush.bf16.msra.mxu0 0
    %168 = vmatpush.bf16.msra.mxu0 %v155
    %169 = vmatpush.bf16.msra.mxu0 %v154
    %170 = vmatmul.bf16.gmra.mxu0 %v160
    %v171 = vpop.f32.mrf.mxu0
    %v172 = vadd.f32 0.0, %v171
    %v173 = vpop.f32.mrf.mxu0
    %174 = vdwg.mxu0
    %v175 = vpack.c.bf16 %v172, %v172
    %v176 = vld [vmem:[#allocation8] sm:$0x2]
    %v178 = vpack.i.b16 %v176, %v176
    %v180 = vperm.slane %v178, 1
    %v181 = vunpack.c.l.bf16 %v175
    %v182 = vunpack.c.l.bf16 %v180
    %v183 = vadd.f32 %v181, %v182
    %v184 = vpack.c.bf16 %v183, %v183
    %v185 = vunpack.c.l.bf16 %v184
    %v186 = vmax.f32 %v185, 0.0
    %v187 = vpack.c.bf16 %v186, %v186
    %v188 = vld [vmem:[#allocation6 + $0x20] sm:$0xf]
    %v189 = vld [vmem:[#allocation6 + $0x24] sm:$0xf]
    %v190 = vld [vmem:[#allocation6 + $0x28] sm:$0xf]
    %v191 = vld [vmem:[#allocation6 + $0x2c] sm:$0xf]
    %v192 = vld [vmem:[#allocation6 + $0x30] sm:$0xf]
    %v193 = vld [vmem:[#allocation6 + $0x34] sm:$0xf]
    %v194 = vld [vmem:[#allocation6 + $0x38] sm:$0xf]
    %v195 = vld [vmem:[#allocation6 + $0x3c] sm:$0xf]
    %v204 = vunpack.c.l.b16 %v188
    %v205 = vunpack.c.l.b16 %v189
    %v206 = vunpack.c.l.b16 %v190
    %v207 = vunpack.c.l.b16 %v191
    %v208 = vunpack.c.l.b16 %v192
    %v209 = vunpack.c.l.b16 %v193
    %v210 = vunpack.c.l.b16 %v194
    %v211 = vunpack.c.l.b16 %v195
    %v212 = vpack.c.b16 %v205, %v204
    %v213 = vpack.c.b16 %v207, %v206
    %v214 = vpack.c.b16 %v209, %v208
    %v215 = vpack.c.b16 %v211, %v210
    %vm220 = vcmask 523264
    %v222 = vsel %vm220, %v187, 0
    %224 = vmatpush.bf16.msra.mxu0 0
    %225 = vmatpush.bf16.msra.mxu0 0
    %226 = vmatpush.bf16.msra.mxu0 0
    %227 = vmatpush.bf16.msra.mxu0 0
    %228 = vmatpush.bf16.msra.mxu0 %v215
    %229 = vmatpush.bf16.msra.mxu0 %v214
    %230 = vmatpush.bf16.msra.mxu0 %v213
    %231 = vmatpush.bf16.msra.mxu0 %v212
    %232 = vmatmul.bf16.gmra.mxu0 %v222
    %v233 = vpop.f32.mrf.mxu0
    %v234 = vadd.f32 0.0, %v233
    %v235 = vpop.f32.mrf.mxu0
    %236 = vdwg.mxu0
    %v237 = vpack.c.bf16 %v234, %v234
    %v238 = vshrl.u32 %v176, 16
    %v239 = vpack.i.b16 %v238, %v238
    %v241 = vperm.slane %v239, 1
    %v242 = vunpack.c.l.bf16 %v237
    %v243 = vunpack.c.l.bf16 %v241
    %v244 = vadd.f32 %v242, %v243
    %v245 = vpack.c.bf16 %v244, %v244
    %v246 = vunpack.c.l.bf16 %v245
    %v247 = vmax.f32 %v246, 0.0
    %v248 = vpack.c.bf16 %v247, %v247
    %v249 = vld [vmem:[#allocation6 + $0x40] sm:$0xf]
    %v250 = vld [vmem:[#allocation6 + $0x44] sm:$0xf]
    %v251 = vld [vmem:[#allocation6 + $0x48] sm:$0xf]
    %v252 = vld [vmem:[#allocation6 + $0x4c] sm:$0xf]
    %v253 = vld [vmem:[#allocation6 + $0x50] sm:$0xf]
    %v254 = vld [vmem:[#allocation6 + $0x54] sm:$0xf]
    %v255 = vld [vmem:[#allocation6 + $0x58] sm:$0xf]
    %v256 = vld [vmem:[#allocation6 + $0x5c] sm:$0xf]
    %v257 = vld [vmem:[#allocation6 + $0x60] sm:$0xf]
    %v258 = vld [vmem:[#allocation6 + $0x64] sm:$0xf]
    %v259 = vld [vmem:[#allocation6 + $0x68] sm:$0xf]
    %v260 = vld [vmem:[#allocation6 + $0x6c] sm:$0xf]
    %v261 = vld [vmem:[#allocation6 + $0x70] sm:$0xf]
    %v262 = vld [vmem:[#allocation6 + $0x74] sm:$0xf]
    %v263 = vld [vmem:[#allocation6 + $0x78] sm:$0xf]
    %v264 = vld [vmem:[#allocation6 + $0x7c] sm:$0xf]
    %v281 = vunpack.c.l.b16 %v249
    %v282 = vunpack.c.l.b16 %v250
    %v283 = vunpack.c.l.b16 %v251
    %v284 = vunpack.c.l.b16 %v252
    %v285 = vunpack.c.l.b16 %v253
    %v286 = vunpack.c.l.b16 %v254
    %v287 = vunpack.c.l.b16 %v255
    %v288 = vunpack.c.l.b16 %v256
    %v289 = vunpack.c.l.b16 %v257
    %v290 = vunpack.c.l.b16 %v258
    %v291 = vunpack.c.l.b16 %v259
    %v292 = vunpack.c.l.b16 %v260
    %v293 = vunpack.c.l.b16 %v261
    %v294 = vunpack.c.l.b16 %v262
    %v295 = vunpack.c.l.b16 %v263
    %v296 = vunpack.c.l.b16 %v264
    %v297 = vpack.c.b16 %v282, %v281
    %v298 = vpack.c.b16 %v284, %v283
    %v299 = vpack.c.b16 %v286, %v285
    %v300 = vpack.c.b16 %v288, %v287
    %v301 = vpack.c.b16 %v290, %v289
    %v302 = vpack.c.b16 %v292, %v291
    %v303 = vpack.c.b16 %v294, %v293
    %v304 = vpack.c.b16 %v296, %v295
    %313 = vmatpush.bf16.msra.mxu0 %v304
    %314 = vmatpush.bf16.msra.mxu0 %v303
    %315 = vmatpush.bf16.msra.mxu0 %v302
    %316 = vmatpush.bf16.msra.mxu0 %v301
    %317 = vmatpush.bf16.msra.mxu0 %v300
    %318 = vmatpush.bf16.msra.mxu0 %v299
    %319 = vmatpush.bf16.msra.mxu0 %v298
    %320 = vmatpush.bf16.msra.mxu0 %v297
    %321 = vmatmul.bf16.gmra.mxu0 %v248
    %v322 = vpop.f32.mrf.mxu0
    %v323 = vadd.f32 0.0, %v322
    %v324 = vpop.f32.mrf.mxu0
    %325 = vdwg.mxu0
    %v326 = vpack.c.bf16 %v323, %v323
    %v327 = vld [vmem:[#allocation8] sm:$0x4]
    %v329 = vpack.i.b16 %v327, %v327
    %v331 = vperm.slane %v329, 2
    %v332 = vunpack.c.l.bf16 %v326
    %v333 = vunpack.c.l.bf16 %v331
    %v334 = vadd.f32 %v332, %v333
    %v335 = vpack.c.bf16 %v334, %v334
    %v336 = vunpack.c.l.bf16 %v335
    %v337 = vmax.f32 %v336, 0.0
    %v338 = vpack.c.bf16 %v337, %v337
    %v339 = vld [vmem:[#allocation6 + $0x80] sm:$0xf]
    %v340 = vld [vmem:[#allocation6 + $0x84] sm:$0xf]
    %v341 = vld [vmem:[#allocation6 + $0x88] sm:$0xf]
    %v342 = vld [vmem:[#allocation6 + $0x8c] sm:$0xf]
    %v343 = vld [vmem:[#allocation6 + $0x90] sm:$0xf]
    %v344 = vld [vmem:[#allocation6 + $0x94] sm:$0xf]
    %v345 = vld [vmem:[#allocation6 + $0x98] sm:$0xf]
    %v346 = vld [vmem:[#allocation6 + $0x9c] sm:$0xf]
    %v355 = vunpack.c.l.b16 %v339
    %v356 = vunpack.c.l.b16 %v340
    %v357 = vunpack.c.l.b16 %v341
    %v358 = vunpack.c.l.b16 %v342
    %v359 = vunpack.c.l.b16 %v343
    %v360 = vunpack.c.l.b16 %v344
    %v361 = vunpack.c.l.b16 %v345
    %v362 = vunpack.c.l.b16 %v346
    %v363 = vpack.c.b16 %v356, %v355
    %v364 = vpack.c.b16 %v358, %v357
    %v365 = vpack.c.b16 %v360, %v359
    %v366 = vpack.c.b16 %v362, %v361
    %v372 = vsel %vm220, %v338, 0
    %374 = vmatpush.bf16.msra.mxu0 0
    %375 = vmatpush.bf16.msra.mxu0 0
    %376 = vmatpush.bf16.msra.mxu0 0
    %377 = vmatpush.bf16.msra.mxu0 0
    %378 = vmatpush.bf16.msra.mxu0 %v366
    %379 = vmatpush.bf16.msra.mxu0 %v365
    %380 = vmatpush.bf16.msra.mxu0 %v364
    %381 = vmatpush.bf16.msra.mxu0 %v363
    %382 = vmatmul.bf16.gmra.mxu0 %v372
    %v383 = vpop.f32.mrf.mxu0
    %v384 = vadd.f32 0.0, %v383
    %v385 = vpop.f32.mrf.mxu0
    %386 = vdwg.mxu0
    %v387 = vpack.c.bf16 %v384, %v384
    %v388 = vshrl.u32 %v327, 16
    %v389 = vpack.i.b16 %v388, %v388
    %v391 = vperm.slane %v389, 2
    %v392 = vunpack.c.l.bf16 %v387
    %v393 = vunpack.c.l.bf16 %v391
    %v394 = vadd.f32 %v392, %v393
    %v395 = vpack.c.bf16 %v394, %v394
    %v396 = vunpack.c.l.bf16 %v395
    %v397 = vmax.f32 %v396, 0.0
    %v398 = vpack.c.bf16 %v397, %v397
    %v399 = vld [vmem:[#allocation6 + $0xa0] sm:$0xf]
    %v400 = vld [vmem:[#allocation6 + $0xa4] sm:$0xf]
    %v401 = vld [vmem:[#allocation6 + $0xa8] sm:$0xf]
    %v402 = vld [vmem:[#allocation6 + $0xac] sm:$0xf]
    %v407 = vunpack.c.l.b16 %v399
    %v408 = vunpack.c.l.b16 %v400
    %v409 = vunpack.c.l.b16 %v401
    %v410 = vunpack.c.l.b16 %v402
    %v411 = vpack.c.b16 %v408, %v407
    %v412 = vpack.c.b16 %v410, %v409
    %v416 = vsel %vm158, %v398, 0
    %418 = vmatpush.bf16.msra.mxu0 0
    %419 = vmatpush.bf16.msra.mxu0 0
    %420 = vmatpush.bf16.msra.mxu0 0
    %421 = vmatpush.bf16.msra.mxu0 0
    %422 = vmatpush.bf16.msra.mxu0 0
    %423 = vmatpush.bf16.msra.mxu0 0
    %424 = vmatpush.bf16.msra.mxu0 %v412
    %425 = vmatpush.bf16.msra.mxu0 %v411
    %426 = vmatmul.bf16.gmra.mxu0 %v416
    %v427 = vpop.f32.mrf.mxu0
    %v428 = vadd.f32 0.0, %v427
    %v429 = vpop.f32.mrf.mxu0
    %430 = vdwg.mxu0
    %v431 = vpack.c.bf16 %v428, %v428
    %v432 = vld [vmem:[#allocation8] sm:$0x8]
    %v434 = vpack.i.b16 %v432, %v432
    %v436 = vperm.slane %v434, 3
    %v437 = vunpack.c.l.bf16 %v431
    %v438 = vunpack.c.l.bf16 %v436
    %v439 = vadd.f32 %v437, %v438
    %v440 = vpack.c.bf16 %v439, %v439
    %v441 = vunpack.c.l.bf16 %v440
    %v442 = vmax.f32 %v441, 0.0
    %v443 = vpack.c.bf16 %v442, %v442
    %v444 = vld [vmem:[#allocation6 + $0xb0] sm:$0xf]
    %v445 = vld [vmem:[#allocation6 + $0xb4] sm:$0xf]
    %v446 = vld [vmem:[#allocation6 + $0xb8] sm:$0xf]
    %v447 = vld [vmem:[#allocation6 + $0xbc] sm:$0xf]
    %v448 = vunpack.c.l.bf16 %v432
    %v449 = vperm.slane %v448, 7
    %v454 = vunpack.c.l.b16 %v444
    %v455 = vunpack.c.l.b16 %v445
    %v456 = vunpack.c.l.b16 %v446
    %v457 = vunpack.c.l.b16 %v447
    %v458 = vpack.c.b16 %v455, %v454
    %v459 = vpack.c.b16 %v457, %v456
    %v463 = vsel %vm158, %v443, 0
    %465 = vmatpush.bf16.msra.mxu0 0
    %466 = vmatpush.bf16.msra.mxu0 0
    %467 = vmatpush.bf16.msra.mxu0 0
    %468 = vmatpush.bf16.msra.mxu0 0
    %469 = vmatpush.bf16.msra.mxu0 0
    %470 = vmatpush.bf16.msra.mxu0 0
    %471 = vmatpush.bf16.msra.mxu0 %v459
    %472 = vmatpush.bf16.msra.mxu0 %v458
    %473 = vmatmul.bf16.gmra.mxu0 %v463
    %v474 = vpop.f32.mrf.mxu0
    %v475 = vadd.f32 %v449, %v474
    %v476 = vpop.f32.mrf.mxu0
    %477 = vdwg.mxu0
    %vm478 = vcmask 23552
    %479 = vst.msk [vmem:[#allocation9] sm:$0xff] %vm478, %v475
    // Predicated region
    $region26: #{actionnet_forward.1} parent=1 // pred_check
      _
    $region27: #{actionnet_forward.1} parent=1 // pred_check_branch
      %481 = sbr.rel (0) target = $region29
    $region28: #{actionnet_forward.1} parent=1 // pred_region
      %483 = vsyncadd [#allocation5], 96
      %s484 = sshll.u32 [#allocation9], 4
      %s485 = int_to_ptr.vmem [resolvable:$true] %s484
      %s486 = sshll.u32 %s3, 4
      %s487 = int_to_ptr.hbm [resolvable:$true] %s486
      %492 = dma.vmem_to_hbm [thread:$0]  %s485, 32, %s487, [#allocation5], 32, 32, 2
    $region29: #{actionnet_forward.1} parent=1 // pred_fallthru
      _
    // Predicated region
    $region30: #{actionnet_forward.1} parent=1 // pred_check
      _
    $region31: #{actionnet_forward.1} parent=1 // pred_check_branch
      %494 = sbr.rel (0) target = $region33
    $region32: #{actionnet_forward.1} parent=1 // pred_region
      %496 = dma.done [#allocation5], 128
    $region33: #{actionnet_forward.1} parent=1 // pred_fallthru
      _
    %497 = vsyncpa [#allocation4], 1
    %498 = vsyncpa [#allocation7], 1
    %499 = vsyncpa [#allocation5], 1

</llo_original>
